<compile_context>
chip_gen: v6e
topology: v6e:2x2x1
jax: 0.10.0
libtpu: 0.0.40
codegen_flags: <defaults>
</compile_context>

<pallas_src>
import functools
import math

import jax
import jax.numpy as jnp
from jax import lax
from jax.experimental import pallas as pl
from jax.experimental.pallas import tpu as pltpu


def _round_up(x: int, m: int) -> int:
    return (x + m - 1) // m * m


def _discrete_input_kernel(x_ref, *rest, offset, scales):
    # x_ref: (TM, offset + num_cat)   rest = (*table_refs, o_ref)
    table_refs = rest[:-1]
    o_ref = rest[-1]
    tm = x_ref.shape[0]

    parts = []
    if offset > 0:
        # Continuous features pass straight through.
        parts.append(x_ref[:, 0:offset].astype(o_ref.dtype))

    for i, t_ref in enumerate(table_refs):
        num_cat = t_ref.shape[0]
        # Categorical column i holds integer ids stored as floats (PyTorch .long() cast).
        idx = x_ref[:, offset + i:offset + i + 1].astype(jnp.int32)          # (TM, 1)
        iota = lax.broadcasted_iota(jnp.int32, (tm, num_cat), 1)             # (TM, C)
        onehot = (iota == idx).astype(t_ref.dtype)                           # (TM, C)
        emb = jnp.dot(onehot, t_ref[...], preferred_element_type=jnp.float32)
        parts.append((emb * scales[i]).astype(o_ref.dtype))                  # * sqrt(d_i)

    # Single lane-contiguous store of the whole output tile.
    o_ref[...] = jnp.concatenate(parts, axis=-1).astype(o_ref.dtype)


def discrete_input_module(x, embedding_tables, offset, *, tm=512):
    """JAX/Pallas port of DiscreteInputModule.forward.

    x:                 (batch, seq, offset + num_cat) float array; columns [offset:]
                       hold integer category ids stored as floats.
    embedding_tables:  list of (num_categories_i, embedding_dim_i) float arrays.
    offset:            number of leading continuous features.
    """
    batch, seq, f = x.shape
    num_cat = len(embedding_tables)
    assert f == offset + num_cat, "feature dim must equal offset + num categorical cols"

    emb_dims = [int(t.shape[1]) for t in embedding_tables]
    scales = tuple(math.sqrt(d) for d in emb_dims)          # InputEmbeddings * sqrt(d)
    out_dim = offset + sum(emb_dims)

    m = batch * seq
    x2d = x.reshape(m, f)

    # Row-tile size: multiple of 8, capped at 512 (small VMEM footprint on all chips).
    tm = min(tm, _round_up(m, 8))
    mp = _round_up(m, tm)
    if mp != m:
        # Pad rows with zeros: category id 0 is valid, padded rows are sliced off below.
        x2d = jnp.pad(x2d, ((0, mp - m), (0, 0)))

    grid = (mp // tm,)

    in_specs = [pl.BlockSpec((tm, f), lambda i: (i, 0))]
    for t in embedding_tables:
        # Full table resident in VMEM across all grid steps.
        in_specs.append(pl.BlockSpec(t.shape, lambda i: (0, 0)))

    flops = int(sum(2 * mp * t.shape[0] * t.shape[1] for t in embedding_tables))
    bytes_accessed = int(4 * (mp * f + sum(int(t.size) for t in embedding_tables)
                              + mp * out_dim))

    kernel = functools.partial(_discrete_input_kernel, offset=offset, scales=scales)

    out2d = pl.pallas_call(
        kernel,
        out_shape=jax.ShapeDtypeStruct((mp, out_dim), x.dtype),
        grid_spec=pl.GridSpec(
            grid=grid,
            in_specs=in_specs,
            out_specs=pl.BlockSpec((tm, out_dim), lambda i: (i, 0)),
        ),
        compiler_params=pltpu.CompilerParams(
            dimension_semantics=("parallel",),
        ),
        cost_estimate=pl.CostEstimate(
            flops=flops, transcendentals=0, bytes_accessed=bytes_accessed),
    )(x2d, *embedding_tables)

    return out2d[:m].reshape(batch, seq, out_dim)


if __name__ == "__main__":
    # Small shapes consistent with the module: 4 continuous + 2 categorical columns.
    batch, seq = 2, 8
    offset = 4
    num_categories = [10, 7]
    embedding_dim = 32

    key = jax.random.PRNGKey(0)
    k_cont, k_cat, k_t0, k_t1 = jax.random.split(key, 4)

    cont = jax.random.normal(k_cont, (batch, seq, offset), jnp.float32)
    cat_keys = jax.random.split(k_cat, len(num_categories))
    cat_cols = [
        jax.random.randint(kk, (batch, seq, 1), 0, nc).astype(jnp.float32)
        for kk, nc in zip(cat_keys, num_categories)
    ]
    x = jnp.concatenate([cont] + cat_cols, axis=-1)            # (2, 8, 6)

    tables = [
        jax.random.normal(k_t0, (num_categories[0], embedding_dim), jnp.float32),
        jax.random.normal(k_t1, (num_categories[1], embedding_dim), jnp.float32),
    ]

    y = discrete_input_module(x, tables, offset)
    jax.block_until_ready(y)

    # Pure-JAX reference matching DiscreteInputModule.forward.
    parts = [x[:, :, :offset]]
    for i, t in enumerate(tables):
        idx = x[:, :, offset + i].astype(jnp.int32)
        parts.append(t[idx] * math.sqrt(t.shape[1]))
    y_ref = jnp.concatenate(parts, axis=-1)

    assert y.shape == (batch, seq, offset + embedding_dim * len(tables))
    assert jnp.allclose(y, y_ref, atol=1e-5, rtol=1e-5)

    print("KERNEL_OK")
</pallas_src>

<mosaic_0001>
module attributes {stable_mosaic.version = 11 : i64} {
  func.func @_discrete_input_kernel(%arg0: i32, %arg1: memref<16x6xf32, #tpu.memory_space<vmem>>, %arg2: memref<10x32xf32, #tpu.memory_space<vmem>>, %arg3: memref<7x32xf32, #tpu.memory_space<vmem>>, %arg4: memref<16x68xf32, #tpu.memory_space<vmem>>) attributes {dimension_semantics = [#tpu.dimension_semantics<parallel>], iteration_bounds = array<i64: 1>, scalar_prefetch = 0 : i64, scratch_operands = 0 : i64, tpu.core_type = #tpu.core_type<tc>, window_params = [{transform_indices = @transform_0, window_bounds = array<i64: 16, 6>}, {pipeline_mode = #tpu.pipeline_mode<synchronous>, transform_indices = @transform_1, window_bounds = array<i64: 10, 32>}, {pipeline_mode = #tpu.pipeline_mode<synchronous>, transform_indices = @transform_2, window_bounds = array<i64: 7, 32>}, {transform_indices = @transform_3, window_bounds = array<i64: 16, 68>}]} {
    %c0 = arith.constant 0 : index
    %c0_0 = arith.constant 0 : index
    %0 = vector.load %arg1[%c0, %c0_0] : memref<16x6xf32, #tpu.memory_space<vmem>>, vector<16x4xf32>
    %c0_1 = arith.constant 0 : index
    %c4 = arith.constant 4 : index
    %1 = vector.load %arg1[%c0_1, %c4] : memref<16x6xf32, #tpu.memory_space<vmem>>, vector<16x1xf32>
    %2 = arith.fptosi %1 : vector<16x1xf32> to vector<16x1xi32>
    %3 = tpu.iota {dimensions = array<i32: 1>} : vector<16x10xi32>
    %4 = vector.broadcast %2 : vector<16x1xi32> to vector<16x10xi32>
    %5 = arith.cmpi eq, %3, %4 : vector<16x10xi32>
    %6 = arith.extui %5 : vector<16x10xi1> to vector<16x10xi32>
    %7 = arith.sitofp %6 : vector<16x10xi32> to vector<16x10xf32>
    %c0_2 = arith.constant 0 : index
    %c0_3 = arith.constant 0 : index
    %8 = vector.load %arg2[%c0_2, %c0_3] : memref<10x32xf32, #tpu.memory_space<vmem>>, vector<10x32xf32>
    %cst = arith.constant dense<0.000000e+00> : vector<16x32xf32>
    %9 = tpu.matmul %7, %8, %cst {dimension_numbers = #tpu.dot_dimension_numbers<[1], [0], [0], [1], [0, 0, 1, 1], [], []>} : vector<16x10xf32>, vector<10x32xf32>, vector<16x32xf32> -> vector<16x32xf32>
    %cst_4 = arith.constant 5.65685415 : f32
    %10 = vector.broadcast %cst_4 : f32 to vector<16x32xf32>
    %11 = arith.mulf %9, %10 : vector<16x32xf32>
    %c0_5 = arith.constant 0 : index
    %c5 = arith.constant 5 : index
    %12 = vector.load %arg1[%c0_5, %c5] : memref<16x6xf32, #tpu.memory_space<vmem>>, vector<16x1xf32>
    %13 = arith.fptosi %12 : vector<16x1xf32> to vector<16x1xi32>
    %14 = tpu.iota {dimensions = array<i32: 1>} : vector<16x7xi32>
    %15 = vector.broadcast %13 : vector<16x1xi32> to vector<16x7xi32>
    %16 = arith.cmpi eq, %14, %15 : vector<16x7xi32>
    %17 = arith.extui %16 : vector<16x7xi1> to vector<16x7xi32>
    %18 = arith.sitofp %17 : vector<16x7xi32> to vector<16x7xf32>
    %c0_6 = arith.constant 0 : index
    %c0_7 = arith.constant 0 : index
    %19 = vector.load %arg3[%c0_6, %c0_7] : memref<7x32xf32, #tpu.memory_space<vmem>>, vector<7x32xf32>
    %cst_8 = arith.constant dense<0.000000e+00> : vector<16x32xf32>
    %20 = tpu.matmul %18, %19, %cst_8 {dimension_numbers = #tpu.dot_dimension_numbers<[1], [0], [0], [1], [0, 0, 1, 1], [], []>} : vector<16x7xf32>, vector<7x32xf32>, vector<16x32xf32> -> vector<16x32xf32>
    %cst_9 = arith.constant 5.65685415 : f32
    %21 = vector.broadcast %cst_9 : f32 to vector<16x32xf32>
    %22 = arith.mulf %20, %21 : vector<16x32xf32>
    %23 = tpu.concatenate %0, %11, %22 in 1 : vector<16x4xf32>, vector<16x32xf32>, vector<16x32xf32> -> vector<16x68xf32>
    %c0_10 = arith.constant 0 : index
    %c0_11 = arith.constant 0 : index
    %24 = vector.load %arg4[%c0_10, %c0_11] : memref<16x68xf32, #tpu.memory_space<vmem>>, vector<16x68xf32>
    tpu.vector_store %arg4[%c0_10, %c0_11], %23 {strides = array<i32>} : memref<16x68xf32, #tpu.memory_space<vmem>>, vector<16x68xf32>,
    return
  }
  func.func @transform_0(%arg0: i32) -> (i32, i32) {
    %c0_i32 = arith.constant 0 : i32
    %c0_i32_0 = arith.constant 0 : i32
    return %arg0, %c0_i32 : i32, i32
  }
  func.func @transform_1(%arg0: i32) -> (i32, i32) {
    %c0_i32 = arith.constant 0 : i32
    %c0_i32_0 = arith.constant 0 : i32
    %c0_i32_1 = arith.constant 0 : i32
    return %c0_i32, %c0_i32_0 : i32, i32
  }
  func.func @transform_2(%arg0: i32) -> (i32, i32) {
    %c0_i32 = arith.constant 0 : i32
    %c0_i32_0 = arith.constant 0 : i32
    %c0_i32_1 = arith.constant 0 : i32
    return %c0_i32, %c0_i32_0 : i32, i32
  }
  func.func @transform_3(%arg0: i32) -> (i32, i32) {
    %c0_i32 = arith.constant 0 : i32
    %c0_i32_0 = arith.constant 0 : i32
    return %arg0, %c0_i32 : i32, i32
  }
}

</mosaic_0001>

<llo_original>
// kernel: tpu_custom_call.1
$region0: #{tpu_custom_call.1}
  #allocation0 [shape = 'u32[]', space=smem, size = 0x4, offset = 0x4, fixed_abs, tag = 'smem constant byte address 0x4 - core index']
  #allocation1 [shape = 'u32[144,128]{1,0:T(1,128)}', space=vmem, size = 0x12000, scoped, tag = 'internal scratch']
  %s0 = inlined_call_operand.vmem [shape: f32[16,6], index: 0, kind: input, shape index: {}]
  %s1 = inlined_call_operand.vmem [shape: f32[10,32], index: 1, kind: input, shape index: {}]
  %s2 = inlined_call_operand.vmem [shape: f32[7,32], index: 2, kind: input, shape index: {}]
  %s3 = inlined_call_operand.hbm [shape: f32[16,68], index: 3, kind: output, shape index: {}]
  %s4 = sld [smem:[#allocation0]]
  $region22: #{tpu_custom_call.1} parent=0
    _
  %s6 = ssub.s32 1, %s4
  %s7 = scalar_select 0, %s6, %s4
  $region1: #{tpu_custom_call.1} parent=0
    #allocation2 [shape = 'u8[8192]{0}', space=vmem, size = 0x2000, scoped, tag = 'output window, operand 0, single buffered']
    #allocation3 [shape = 's32[1]{0}', space=sflag, size = 0x4, scoped, tag = 'scoped memory for tpu_custom_call.1']
    %8 = vsyncpa [#allocation3], 0
    // Predicated region
    $region2: #{tpu_custom_call.1} parent=1 // pred_check
      _
    $region3: #{tpu_custom_call.1} parent=1 // pred_check_branch
      %10 = sbr.rel (0) target = $region5
    $region4: #{tpu_custom_call.1} parent=1 // pred_region
      _
    $region5: #{tpu_custom_call.1} parent=1 // pred_fallthru
      _
    // Predicated region
    $region6: #{tpu_custom_call.1} parent=1 // pred_check
      _
    $region7: #{tpu_custom_call.1} parent=1 // pred_check_branch
      %12 = sbr.rel (0) target = $region9
    $region8: #{tpu_custom_call.1} parent=1 // pred_region
      _
    $region9: #{tpu_custom_call.1} parent=1 // pred_fallthru
      _
    // Predicated region
    $region10: #{tpu_custom_call.1} parent=1 // pred_check
      _
    $region11: #{tpu_custom_call.1} parent=1 // pred_check_branch
      %14 = sbr.rel (0) target = $region13
    $region12: #{tpu_custom_call.1} parent=1 // pred_region
      _
    $region13: #{tpu_custom_call.1} parent=1 // pred_fallthru
      _
    %v15 = vld [vmem:[%s0] sm:$0xff]
    %v16 = vld [vmem:[%s0 + $0x8] sm:$0xff]
    %v17 = vcvt.f32.s32.to.zero.pseudo %v15
    %v18 = vcvt.f32.s32.to.zero.pseudo %v16
    %v19 = vlaneseq
    %v20 = vand.u32 %v19, 127
    %21 = vset.pattern.permute.xlu0 4
    %22 = vperm.xlu0 %21, %v17
    %v23 = vpop.permute.xlu0 %22
    %24 = vset.pattern.permute.xlu0 4
    %25 = vperm.xlu0 %24, %v18
    %v26 = vpop.permute.xlu0 %25
    %vm27 = vcmp.eq.s32.totalorder %v20, %v23
    %vm28 = vcmp.eq.s32.totalorder %v20, %v26
    %v29 = vsel %vm27, 1, 0
    %v30 = vsel %vm28, 1, 0
    %v31 = vcvt.s32.f32 %v29
    %v32 = vcvt.s32.f32 %v30
    %v33 = vld [vmem:[%s1] sm:$0xff]
    %v34 = vld [vmem:[%s1 + $0x8] sm:$0x3]
    %vm35 = vcmask 80896
    %v37 = vsel %vm35, %v31, 0
    %v40 = vsel %vm35, %v32, 0
    %vm42 = vcmask 1041408
    %v44 = vsel %vm42, %v34, 0
    %46 = vmatprep.subr.mxu0 0.0
    %47 = vmatpush1.msra.mxu0 0.0
    %48 = vmatprep.subr.mxu0 0.0
    %49 = vmatpush1.msra.mxu0 0.0
    %50 = vmatprep.subr.mxu0 0.0
    %51 = vmatpush1.msra.mxu0 0.0
    %52 = vmatprep.subr.mxu0 0.0
    %53 = vmatpush1.msra.mxu0 0.0
    %54 = vmatprep.subr.mxu0 0.0
    %55 = vmatpush1.msra.mxu0 0.0
    %56 = vmatprep.subr.mxu0 0.0
    %57 = vmatpush1.msra.mxu0 0.0
    %58 = vmatprep.subr.mxu0 0.0
    %59 = vmatpush1.msra.mxu0 0.0
    %60 = vmatprep.subr.mxu0 0.0
    %61 = vmatpush1.msra.mxu0 0.0
    %62 = vmatprep.subr.mxu0 0.0
    %63 = vmatpush1.msra.mxu0 0.0
    %64 = vmatprep.subr.mxu0 0.0
    %65 = vmatpush1.msra.mxu0 0.0
    %66 = vmatprep.subr.mxu0 0.0
    %67 = vmatpush1.msra.mxu0 0.0
    %68 = vmatprep.subr.mxu0 0.0
    %69 = vmatpush1.msra.mxu0 0.0
    %70 = vmatprep.subr.mxu0 0.0
    %71 = vmatpush1.msra.mxu0 0.0
    %72 = vmatprep.subr.mxu0 0.0
    %73 = vmatpush1.msra.mxu0 0.0
    %74 = vmatprep.subr.mxu0 0.0
    %75 = vmatpush1.msra.mxu0 %v44
    %76 = vmatprep.subr.mxu0 0.0
    %77 = vmatpush1.msra.mxu0 %v33
    %78 = vmatprep.subr.mxu0 0.0
    %79 = vmatpush2.msra.mxu0 0.0
    %80 = vmatprep.subr.mxu0 0.0
    %81 = vmatpush2.msra.mxu0 0.0
    %82 = vmatprep.subr.mxu0 0.0
    %83 = vmatpush2.msra.mxu0 0.0
    %84 = vmatprep.subr.mxu0 0.0
    %85 = vmatpush2.msra.mxu0 0.0
    %86 = vmatprep.subr.mxu0 0.0
    %87 = vmatpush2.msra.mxu0 0.0
    %88 = vmatprep.subr.mxu0 0.0
    %89 = vmatpush2.msra.mxu0 0.0
    %90 = vmatprep.subr.mxu0 0.0
    %91 = vmatpush2.msra.mxu0 0.0
    %92 = vmatprep.subr.mxu0 0.0
    %93 = vmatpush2.msra.mxu0 0.0
    %94 = vmatprep.subr.mxu0 0.0
    %95 = vmatpush2.msra.mxu0 0.0
    %96 = vmatprep.subr.mxu0 0.0
    %97 = vmatpush2.msra.mxu0 0.0
    %98 = vmatprep.subr.mxu0 0.0
    %99 = vmatpush2.msra.mxu0 0.0
    %100 = vmatprep.subr.mxu0 0.0
    %101 = vmatpush2.msra.mxu0 0.0
    %102 = vmatprep.subr.mxu0 0.0
    %103 = vmatpush2.msra.mxu0 0.0
    %104 = vmatprep.subr.mxu0 0.0
    %105 = vmatpush2.msra.mxu0 0.0
    %106 = vmatprep.subr.mxu0 0.0
    %107 = vmatpush2.msra.mxu0 0.0
    %108 = vmatprep.subr.mxu0 0.0
    %109 = vmatpush2.msra.mxu0 0.0
    %110 = vmatprep.mubr.f32.mxu0 0.0
    %111 = vmatmul.mubr.f32.gmra.mxu0 %v37
    %v112 = vpop.f32.mrf.mxu0
    %v113 = vadd.f32 0.0, %v112
    %v114 = vpop.f32.mrf.mxu0
    %115 = vmatprep.mubr.f32.mxu0 0.0
    %116 = vmatmul.mubr.f32.gmra.mxu0 %v40
    %v117 = vpop.f32.mrf.mxu0
    %v118 = vadd.f32 0.0, %v117
    %v119 = vpop.f32.mrf.mxu0
    %120 = vdwg.mxu0
    %v121 = vmul.f32 %v113, 5.656854
    %v122 = vmul.f32 %v118, 5.656854
    %123 = vset.pattern.permute.xlu0 5
    %124 = vperm.xlu0 %123, %v17
    %v125 = vpop.permute.xlu0 %124
    %126 = vset.pattern.permute.xlu0 5
    %127 = vperm.xlu0 %126, %v18
    %v128 = vpop.permute.xlu0 %127
    %vm129 = vcmp.eq.s32.totalorder %v20, %v125
    %vm130 = vcmp.eq.s32.totalorder %v20, %v128
    %v131 = vsel %vm129, 1, 0
    %v132 = vsel %vm130, 1, 0
    %v133 = vcvt.s32.f32 %v131
    %v134 = vcvt.s32.f32 %v132
    %v135 = vld [vmem:[%s2] sm:$0x7f]
    %vm136 = vcmask 56320
    %v138 = vsel %vm136, %v133, 0
    %v141 = vsel %vm136, %v134, 0
    %vm143 = vcmask 1046528
    %v145 = vsel %vm143, %v135, 0
    %147 = vmatprep.subr.mxu0 0.0
    %148 = vmatpush1.msra.mxu0 0.0
    %149 = vmatprep.subr.mxu0 0.0
    %150 = vmatpush1.msra.mxu0 0.0
    %151 = vmatprep.subr.mxu0 0.0
    %152 = vmatpush1.msra.mxu0 0.0
    %153 = vmatprep.subr.mxu0 0.0
    %154 = vmatpush1.msra.mxu0 0.0
    %155 = vmatprep.subr.mxu0 0.0
    %156 = vmatpush1.msra.mxu0 0.0
    %157 = vmatprep.subr.mxu0 0.0
    %158 = vmatpush1.msra.mxu0 0.0
    %159 = vmatprep.subr.mxu0 0.0
    %160 = vmatpush1.msra.mxu0 0.0
    %161 = vmatprep.subr.mxu0 0.0
    %162 = vmatpush1.msra.mxu0 0.0
    %163 = vmatprep.subr.mxu0 0.0
    %164 = vmatpush1.msra.mxu0 0.0
    %165 = vmatprep.subr.mxu0 0.0
    %166 = vmatpush1.msra.mxu0 0.0
    %167 = vmatprep.subr.mxu0 0.0
    %168 = vmatpush1.msra.mxu0 0.0
    %169 = vmatprep.subr.mxu0 0.0
    %170 = vmatpush1.msra.mxu0 0.0
    %171 = vmatprep.subr.mxu0 0.0
    %172 = vmatpush1.msra.mxu0 0.0
    %173 = vmatprep.subr.mxu0 0.0
    %174 = vmatpush1.msra.mxu0 0.0
    %175 = vmatprep.subr.mxu0 0.0
    %176 = vmatpush1.msra.mxu0 0.0
    %177 = vmatprep.subr.mxu0 0.0
    %178 = vmatpush1.msra.mxu0 %v145
    %179 = vmatprep.subr.mxu0 0.0
    %180 = vmatpush2.msra.mxu0 0.0
    %181 = vmatprep.subr.mxu0 0.0
    %182 = vmatpush2.msra.mxu0 0.0
    %183 = vmatprep.subr.mxu0 0.0
    %184 = vmatpush2.msra.mxu0 0.0
    %185 = vmatprep.subr.mxu0 0.0
    %186 = vmatpush2.msra.mxu0 0.0
    %187 = vmatprep.subr.mxu0 0.0
    %188 = vmatpush2.msra.mxu0 0.0
    %189 = vmatprep.subr.mxu0 0.0
    %190 = vmatpush2.msra.mxu0 0.0
    %191 = vmatprep.subr.mxu0 0.0
    %192 = vmatpush2.msra.mxu0 0.0
    %193 = vmatprep.subr.mxu0 0.0
    %194 = vmatpush2.msra.mxu0 0.0
    %195 = vmatprep.subr.mxu0 0.0
    %196 = vmatpush2.msra.mxu0 0.0
    %197 = vmatprep.subr.mxu0 0.0
    %198 = vmatpush2.msra.mxu0 0.0
    %199 = vmatprep.subr.mxu0 0.0
    %200 = vmatpush2.msra.mxu0 0.0
    %201 = vmatprep.subr.mxu0 0.0
    %202 = vmatpush2.msra.mxu0 0.0
    %203 = vmatprep.subr.mxu0 0.0
    %204 = vmatpush2.msra.mxu0 0.0
    %205 = vmatprep.subr.mxu0 0.0
    %206 = vmatpush2.msra.mxu0 0.0
    %207 = vmatprep.subr.mxu0 0.0
    %208 = vmatpush2.msra.mxu0 0.0
    %209 = vmatprep.subr.mxu0 0.0
    %210 = vmatpush2.msra.mxu0 0.0
    %211 = vmatprep.mubr.f32.mxu0 0.0
    %212 = vmatmul.mubr.f32.gmra.mxu0 %v138
    %v213 = vpop.f32.mrf.mxu0
    %v214 = vadd.f32 0.0, %v213
    %v215 = vpop.f32.mrf.mxu0
    %216 = vmatprep.mubr.f32.mxu0 0.0
    %217 = vmatmul.mubr.f32.gmra.mxu0 %v141
    %v218 = vpop.f32.mrf.mxu0
    %v219 = vadd.f32 0.0, %v218
    %v220 = vpop.f32.mrf.mxu0
    %221 = vdwg.mxu0
    %v222 = vmul.f32 %v214, 5.656854
    %v223 = vmul.f32 %v219, 5.656854
    %226 = vrot.lane.b32.xlu0 %v121, 4
    %v227 = vpop.permute.xlu0 %226
    %228 = vrot.lane.b32.xlu0 %v122, 4
    %v229 = vpop.permute.xlu0 %228
    %234 = vrot.lane.b32.xlu0 %v222, 36
    %v235 = vpop.permute.xlu0 %234
    %236 = vrot.lane.b32.xlu0 %v223, 36
    %v237 = vpop.permute.xlu0 %236
    %vm240 = vcmask 31744
    %v241 = vsel %vm240, %v15, %v227
    %v242 = vsel %vm240, %v16, %v229
    %vm243 = vcmask 293888
    %v244 = vsel %vm243, %v241, %v235
    %v245 = vsel %vm243, %v242, %v237
    %vm246 = vcmask 556032
    %247 = vst.msk [vmem:[#allocation2] sm:$0xff] %vm246, %v244
    %248 = vst.msk [vmem:[#allocation2 + $0x8] sm:$0xff] %vm246, %v245
    // Predicated region
    $region14: #{tpu_custom_call.1} parent=1 // pred_check
      _
    $region15: #{tpu_custom_call.1} parent=1 // pred_check_branch
      %250 = sbr.rel (0) target = $region17
    $region16: #{tpu_custom_call.1} parent=1 // pred_region
      %s252 = ssub.s32 256, 256
      %253 = vsyncadd [#allocation3], %s252
      %s254 = sshll.u32 [#allocation2], 4
      %s255 = int_to_ptr.vmem [resolvable:$true] %s254
      %260 = dma.vmem_to_hbm [thread:$0]  %s255, 256, %s3, [#allocation3], 128, 128, 8
    $region17: #{tpu_custom_call.1} parent=1 // pred_fallthru
      _
    // Predicated region
    $region18: #{tpu_custom_call.1} parent=1 // pred_check
      _
    $region19: #{tpu_custom_call.1} parent=1 // pred_check_branch
      %262 = sbr.rel (0) target = $region21
    $region20: #{tpu_custom_call.1} parent=1 // pred_region
      %263 = dma.done [#allocation3], 256
    $region21: #{tpu_custom_call.1} parent=1 // pred_fallthru
      _
    %264 = vsyncpa [#allocation3], 1

</llo_original>
